<compile_context>
chip_gen: v7x
topology: tpu7x:2x2x1
jax: 0.10.0
libtpu: 0.0.40
codegen_flags: <defaults>
</compile_context>

<pallas_src>
import math

import jax
import jax.numpy as jnp
from jax.experimental import pallas as pl
from jax.experimental.pallas import tpu as pltpu


def _make_disc_kernel(has_sb1, has_sb2):
    def kernel(wc_ref, hpl_ref, hmi_ref, b_ref, *rest):
        # wc_ref:  (tb, n_h)        precomputed W @ c rows (f32)
        # hpl_ref: (tb, tn, n_h)    positive node embeddings tile
        # hmi_ref: (tb, tn, n_h)    negative node embeddings tile
        # b_ref:   (1, 1) in SMEM   bilinear bias scalar
        # [sb1_ref / sb2_ref]: (tb, tn) optional additive biases
        # out_ref: (tb, 2, tn)      fused [sc_1; sc_2] tile
        refs = list(rest)
        sb1_ref = refs.pop(0) if has_sb1 else None
        sb2_ref = refs.pop(0) if has_sb2 else None
        out_ref = refs.pop(0)

        wc = wc_ref[...].astype(jnp.float32)[:, None, :]      # (tb, 1, n_h)
        bias = b_ref[0, 0]

        sc1 = jnp.sum(hpl_ref[...].astype(jnp.float32) * wc, axis=-1) + bias
        sc2 = jnp.sum(hmi_ref[...].astype(jnp.float32) * wc, axis=-1) + bias
        if has_sb1:
            sc1 = sc1 + sb1_ref[...].astype(jnp.float32)
        if has_sb2:
            sc2 = sc2 + sb2_ref[...].astype(jnp.float32)

        out_ref[:, 0:1, :] = sc1[:, None, :].astype(out_ref.dtype)
        out_ref[:, 1:2, :] = sc2[:, None, :].astype(out_ref.dtype)

    return kernel


def _choose_tiles(B, N, n_h, itemsize):
    """Pick (batch_tile, node_tile) that exactly tile (B, N), keep lane/sublane
    density when shapes allow, and bound the double-buffered VMEM footprint."""
    tb = 8 if B % 8 == 0 else B          # sublane-dense batch tile when possible
    if N % 128 == 0:
        tn = 128
        # Grow the node tile while it still divides N and 2 inputs x 2 buffers
        # of (tb, tn, n_h) stay under ~24 MiB (safe for v7x's 64 MiB VMEM too).
        while (N % (tn * 2) == 0
               and 2 * 2 * tb * (tn * 2) * n_h * itemsize <= 24 * 1024 * 1024):
            tn *= 2
    else:
        tn = N                            # full-dim escape hatch for odd N
    return tb, tn


def discriminator_forward(c, h_pl, h_mi, weight, bias, s_bias1=None, s_bias2=None):
    """Pallas implementation of Discriminator.forward.

    c:      (B, n_h)
    h_pl:   (B, N, n_h)
    h_mi:   (B, N, n_h)
    weight: (1, n_h, n_h)   nn.Bilinear weight
    bias:   (1,)            nn.Bilinear bias
    returns logits: (B, 2N) float32
    """
    B, N, n_h = h_pl.shape
    w2d = weight.reshape(n_h, n_h)

    # Hoisted out of the kernel: wc[b, i] = sum_j W[i, j] * c[b, j]  (tiny matmul).
    wc = jnp.einsum("ij,bj->bi", w2d.astype(jnp.float32), c.astype(jnp.float32))
    bias_sm = jnp.asarray(bias, jnp.float32).reshape(1, 1)

    itemsize = jnp.dtype(h_pl.dtype).itemsize
    tb, tn = _choose_tiles(B, N, n_h, itemsize)
    grid = (B // tb, N // tn)

    has_sb1 = s_bias1 is not None
    has_sb2 = s_bias2 is not None

    in_specs = [
        pl.BlockSpec((tb, n_h), lambda bi, ni: (bi, 0)),          # wc
        pl.BlockSpec((tb, tn, n_h), lambda bi, ni: (bi, ni, 0)),  # h_pl
        pl.BlockSpec((tb, tn, n_h), lambda bi, ni: (bi, ni, 0)),  # h_mi
        pl.BlockSpec(memory_space=pltpu.MemorySpace.SMEM),        # bias scalar
    ]
    inputs = [wc, h_pl, h_mi, bias_sm]
    if has_sb1:
        inputs.append(jnp.broadcast_to(jnp.asarray(s_bias1, jnp.float32), (B, N)))
        in_specs.append(pl.BlockSpec((tb, tn), lambda bi, ni: (bi, ni)))
    if has_sb2:
        inputs.append(jnp.broadcast_to(jnp.asarray(s_bias2, jnp.float32), (B, N)))
        in_specs.append(pl.BlockSpec((tb, tn), lambda bi, ni: (bi, ni)))

    # Explicit VMEM budget: block bytes * (double buffering + slack), clamped.
    block_bytes = (
        tb * n_h * 4
        + 2 * tb * tn * n_h * itemsize
        + tb * 2 * tn * 4
        + (tb * tn * 4 if has_sb1 else 0)
        + (tb * tn * 4 if has_sb2 else 0)
    )
    vmem_limit = int(min(64 * 1024 * 1024,
                         max(16 * 1024 * 1024, 4 * block_bytes + (1 << 20))))

    out = pl.pallas_call(
        _make_disc_kernel(has_sb1, has_sb2),
        out_shape=jax.ShapeDtypeStruct((B, 2, N), jnp.float32),
        grid_spec=pltpu.PrefetchScalarGridSpec(
            num_scalar_prefetch=0,
            grid=grid,
            in_specs=in_specs,
            out_specs=pl.BlockSpec((tb, 2, tn), lambda bi, ni: (bi, 0, ni)),
        ),
        compiler_params=pltpu.CompilerParams(
            dimension_semantics=("parallel", "parallel"),
            vmem_limit_bytes=vmem_limit,
        ),
    )(*inputs)

    # (B, 2, N) -> (B, 2N): contiguous (free) reshape == torch.cat((sc_1, sc_2), 1)
    return out.reshape(B, 2 * N)


def init_params(key, n_h):
    """Deterministic params matching nn.Bilinear(n_h, n_h, 1) + weights_init."""
    # xavier_uniform_ on weight of shape (1, n_h, n_h):
    #   fan_in = n_h * n_h, fan_out = 1 * n_h
    fan_in = n_h * n_h
    fan_out = 1 * n_h
    bound = math.sqrt(6.0 / (fan_in + fan_out))
    weight = jax.random.uniform(
        key, (1, n_h, n_h), dtype=jnp.float32, minval=-bound, maxval=bound
    )
    bias = jnp.zeros((1,), dtype=jnp.float32)  # bias.data.fill_(0.0)
    return weight, bias


def _reference(c, h_pl, h_mi, weight, bias, s_bias1=None, s_bias2=None):
    n_h = c.shape[-1]
    w2d = weight.reshape(n_h, n_h)
    sc1 = jnp.einsum("bni,ij,bj->bn", h_pl, w2d, c) + bias[0]
    sc2 = jnp.einsum("bni,ij,bj->bn", h_mi, w2d, c) + bias[0]
    if s_bias1 is not None:
        sc1 = sc1 + s_bias1
    if s_bias2 is not None:
        sc2 = sc2 + s_bias2
    return jnp.concatenate([sc1, sc2], axis=1)


if __name__ == "__main__":
    key = jax.random.PRNGKey(0)

    # --- Test 1: small shapes matching the module spec (B=2, N=8, n_h=32) ---
    B, N, n_h = 2, 8, 32
    k_w, k_c, k_pl, k_mi = jax.random.split(key, 4)
    weight, bias = init_params(k_w, n_h)
    c = jax.random.normal(k_c, (B, n_h), dtype=jnp.float32)
    h_pl = jax.random.normal(k_pl, (B, N, n_h), dtype=jnp.float32)
    h_mi = jax.random.normal(k_mi, (B, N, n_h), dtype=jnp.float32)

    logits = jax.block_until_ready(discriminator_forward(c, h_pl, h_mi, weight, bias))
    ref = _reference(c, h_pl, h_mi, weight, bias)
    assert logits.shape == (B, 2 * N)
    assert jnp.allclose(logits, ref, atol=1e-4, rtol=1e-5)

    # --- Test 2: tiled path (lane/sublane-dense blocks) + fused s_bias adds ---
    B2, N2, n_h2 = 8, 256, 64
    k_w2, k_c2, k_pl2, k_mi2, k_s1, k_s2 = jax.random.split(jax.random.PRNGKey(0), 6)
    weight2, bias2 = init_params(k_w2, n_h2)
    bias2 = bias2 + 0.25  # non-zero bias to exercise the SMEM path
    c2 = jax.random.normal(k_c2, (B2, n_h2), dtype=jnp.float32)
    h_pl2 = jax.random.normal(k_pl2, (B2, N2, n_h2), dtype=jnp.float32)
    h_mi2 = jax.random.normal(k_mi2, (B2, N2, n_h2), dtype=jnp.float32)
    sb1 = jax.random.normal(k_s1, (B2, N2), dtype=jnp.float32)
    sb2 = jax.random.normal(k_s2, (B2, N2), dtype=jnp.float32)

    logits2 = jax.block_until_ready(
        discriminator_forward(c2, h_pl2, h_mi2, weight2, bias2, sb1, sb2)
    )
    ref2 = _reference(c2, h_pl2, h_mi2, weight2, bias2, sb1, sb2)
    assert logits2.shape == (B2, 2 * N2)
    assert jnp.allclose(logits2, ref2, atol=1e-4, rtol=1e-5)

    print("KERNEL_OK")
</pallas_src>

<mosaic_0001>
module attributes {stable_mosaic.version = 11 : i64} {
  func.func @kernel(%arg0: i32, %arg1: i32, %arg2: memref<2x32xf32, #tpu.memory_space<vmem>>, %arg3: memref<2x8x32xf32, #tpu.memory_space<vmem>>, %arg4: memref<2x8x32xf32, #tpu.memory_space<vmem>>, %arg5: memref<1x1xf32, #tpu.memory_space<smem>>, %arg6: memref<2x2x8xf32, #tpu.memory_space<vmem>>) attributes {dimension_semantics = [#tpu.dimension_semantics<parallel>, #tpu.dimension_semantics<parallel>], iteration_bounds = array<i64: 1, 1>, scalar_prefetch = 0 : i64, scratch_operands = 0 : i64, tpu.core_type = #tpu.core_type<tc>, window_params = [{transform_indices = @transform_0, window_bounds = array<i64: 2, 32>}, {transform_indices = @transform_1, window_bounds = array<i64: 2, 8, 32>}, {transform_indices = @transform_2, window_bounds = array<i64: 2, 8, 32>}, {transform_indices = @transform_3, window_bounds = array<i64: 1, 1>}, {transform_indices = @transform_4, window_bounds = array<i64: 2, 2, 8>}]} {
    %c0 = arith.constant 0 : index
    %c0_0 = arith.constant 0 : index
    %0 = vector.load %arg2[%c0, %c0_0] : memref<2x32xf32, #tpu.memory_space<vmem>>, vector<2x32xf32>
    %1 = vector.shape_cast %0 : vector<2x32xf32> to vector<2x1x32xf32>
    %c0_1 = arith.constant 0 : index
    %c0_2 = arith.constant 0 : index
    %2 = memref.load %arg5[%c0_1, %c0_2] : memref<1x1xf32, #tpu.memory_space<smem>>
    %c0_3 = arith.constant 0 : index
    %c0_4 = arith.constant 0 : index
    %c0_5 = arith.constant 0 : index
    %3 = vector.load %arg3[%c0_3, %c0_4, %c0_5] : memref<2x8x32xf32, #tpu.memory_space<vmem>>, vector<2x8x32xf32>
    %4 = vector.broadcast %1 : vector<2x1x32xf32> to vector<2x8x32xf32>
    %5 = arith.mulf %3, %4 : vector<2x8x32xf32>
    %cst = arith.constant dense<0.000000e+00> : vector<2x8xf32>
    %6 = vector.multi_reduction <add>, %5, %cst [2] : vector<2x8x32xf32> to vector<2x8xf32>
    %7 = vector.broadcast %2 : f32 to vector<2x8xf32>
    %8 = arith.addf %6, %7 : vector<2x8xf32>
    %c0_6 = arith.constant 0 : index
    %c0_7 = arith.constant 0 : index
    %c0_8 = arith.constant 0 : index
    %9 = vector.load %arg4[%c0_6, %c0_7, %c0_8] : memref<2x8x32xf32, #tpu.memory_space<vmem>>, vector<2x8x32xf32>
    %10 = vector.broadcast %1 : vector<2x1x32xf32> to vector<2x8x32xf32>
    %11 = arith.mulf %9, %10 : vector<2x8x32xf32>
    %cst_9 = arith.constant dense<0.000000e+00> : vector<2x8xf32>
    %12 = vector.multi_reduction <add>, %11, %cst_9 [2] : vector<2x8x32xf32> to vector<2x8xf32>
    %13 = vector.broadcast %2 : f32 to vector<2x8xf32>
    %14 = arith.addf %12, %13 : vector<2x8xf32>
    %15 = vector.shape_cast %8 : vector<2x8xf32> to vector<2x1x8xf32>
    %c0_10 = arith.constant 0 : index
    %c0_11 = arith.constant 0 : index
    %c0_12 = arith.constant 0 : index
    %16 = vector.load %arg6[%c0_10, %c0_11, %c0_12] : memref<2x2x8xf32, #tpu.memory_space<vmem>>, vector<2x1x8xf32>
    tpu.vector_store %arg6[%c0_10, %c0_11, %c0_12], %15 {strides = array<i32>} : memref<2x2x8xf32, #tpu.memory_space<vmem>>, vector<2x1x8xf32>,
    %17 = vector.shape_cast %14 : vector<2x8xf32> to vector<2x1x8xf32>
    %c0_13 = arith.constant 0 : index
    %c1 = arith.constant 1 : index
    %c0_14 = arith.constant 0 : index
    %18 = vector.load %arg6[%c0_13, %c1, %c0_14] : memref<2x2x8xf32, #tpu.memory_space<vmem>>, vector<2x1x8xf32>
    tpu.vector_store %arg6[%c0_13, %c1, %c0_14], %17 {strides = array<i32>} : memref<2x2x8xf32, #tpu.memory_space<vmem>>, vector<2x1x8xf32>,
    return
  }
  func.func @transform_0(%arg0: i32, %arg1: i32) -> (i32, i32) {
    %c0_i32 = arith.constant 0 : i32
    %c0_i32_0 = arith.constant 0 : i32
    return %arg0, %c0_i32 : i32, i32
  }
  func.func @transform_1(%arg0: i32, %arg1: i32) -> (i32, i32, i32) {
    %c0_i32 = arith.constant 0 : i32
    %c0_i32_0 = arith.constant 0 : i32
    return %arg0, %arg1, %c0_i32 : i32, i32, i32
  }
  func.func @transform_2(%arg0: i32, %arg1: i32) -> (i32, i32, i32) {
    %c0_i32 = arith.constant 0 : i32
    %c0_i32_0 = arith.constant 0 : i32
    return %arg0, %arg1, %c0_i32 : i32, i32, i32
  }
  func.func @transform_3(%arg0: i32, %arg1: i32) -> (i32, i32) {
    %c0_i32 = arith.constant 0 : i32
    %c0_i32_0 = arith.constant 0 : i32
    %c0_i32_1 = arith.constant 0 : i32
    return %c0_i32, %c0_i32_0 : i32, i32
  }
  func.func @transform_4(%arg0: i32, %arg1: i32) -> (i32, i32, i32) {
    %c0_i32 = arith.constant 0 : i32
    %c0_i32_0 = arith.constant 0 : i32
    return %arg0, %c0_i32, %arg1 : i32, i32, i32
  }
}

</mosaic_0001>

<llo_original>
// kernel: tpu_custom_call.1
$region0: #{tpu_custom_call.1}
  #allocation0 [shape = 'u32[]', space=smem, size = 0x4, offset = 0x4, fixed_abs, tag = 'smem constant byte address 0x4 - core index']
  #allocation1 [shape = 'u32[144,128]{1,0:T(1,128)}', space=vmem, size = 0x12000, scoped, tag = 'internal scratch']
  #allocation2 [shape = 'f32[1,1]{1,0:T(1,128)S(6)}', space=smem, size = 0x200, scoped, tag = 'scoped memory for tpu_custom_call.1']
  %s0 = inlined_call_operand.vmem [shape: f32[2,32], index: 0, kind: input, shape index: {}]
  %s1 = inlined_call_operand.hbm [shape: f32[2,8,32], index: 1, kind: input, shape index: {}]
  %s2 = inlined_call_operand.hbm [shape: f32[2,8,32], index: 2, kind: input, shape index: {}]
  %s3 = inlined_call_operand.<no memory space> [shape: f32[1,1], index: 3, kind: input, shape index: {}]
  %s4 = inlined_call_operand.hbm [shape: f32[2,2,8], index: 4, kind: output, shape index: {}]
  %s5 = sld [smem:[#allocation0]]
  $region34: #{tpu_custom_call.1} parent=0
    _
  %s7 = ssub.s32 1, %s5
  %s8 = scalar_select 0, %s7, %s5
  %9 = sst [smem:[#allocation2]] %s3
  $region1: #{tpu_custom_call.1} parent=0
    #allocation3 [shape = 'u8[8192]{0}', space=vmem, size = 0x2000, scoped, tag = 'input window, operand 1, single buffered']
    #allocation4 [shape = 's32[1]{0}', space=sflag, size = 0x4, scoped, tag = 'scoped memory for tpu_custom_call.1']
    #allocation5 [shape = 's32[1]{0}', space=sflag, size = 0x4, scoped, tag = 'scoped memory for tpu_custom_call.1']
    #allocation6 [shape = 'u8[8192]{0}', space=vmem, size = 0x2000, scoped, tag = 'input window, operand 2, single buffered']
    #allocation7 [shape = 's32[1]{0}', space=sflag, size = 0x4, scoped, tag = 'scoped memory for tpu_custom_call.1']
    #allocation8 [shape = 'u8[2048]{0}', space=vmem, size = 0x800, scoped, tag = 'output window, operand 0, single buffered']
    %10 = vsyncpa [#allocation4], 0
    %11 = vsyncpa [#allocation7], 0
    %12 = vsyncpa [#allocation5], 0
    // Predicated region
    $region2: #{tpu_custom_call.1} parent=1 // pred_check
      _
    $region3: #{tpu_custom_call.1} parent=1 // pred_check_branch
      %14 = sbr.rel (0) target = $region5
    $region4: #{tpu_custom_call.1} parent=1 // pred_region
      _
    $region5: #{tpu_custom_call.1} parent=1 // pred_fallthru
      _
    // Predicated region
    $region6: #{tpu_custom_call.1} parent=1 // pred_check
      _
    $region7: #{tpu_custom_call.1} parent=1 // pred_check_branch
      %16 = sbr.rel (0) target = $region9
    $region8: #{tpu_custom_call.1} parent=1 // pred_region
      %s18 = ssub.s32 256, 256
      %19 = vsyncadd [#allocation4], %s18
      %s20 = sshll.u32 [#allocation3], 4
      %s21 = int_to_ptr.vmem [resolvable:$true] %s20
      %26 = dma.hbm_to_vmem [thread:$0]  %s1, 256, %s21, [#allocation4], 128, 128, 8
    $region9: #{tpu_custom_call.1} parent=1 // pred_fallthru
      _
    // Predicated region
    $region10: #{tpu_custom_call.1} parent=1 // pred_check
      _
    $region11: #{tpu_custom_call.1} parent=1 // pred_check_branch
      %28 = sbr.rel (0) target = $region13
    $region12: #{tpu_custom_call.1} parent=1 // pred_region
      %s30 = ssub.s32 256, 256
      %31 = vsyncadd [#allocation7], %s30
      %s32 = sshll.u32 [#allocation6], 4
      %s33 = int_to_ptr.vmem [resolvable:$true] %s32
      %38 = dma.hbm_to_vmem [thread:$0]  %s2, 256, %s33, [#allocation7], 128, 128, 8
    $region13: #{tpu_custom_call.1} parent=1 // pred_fallthru
      _
    // Predicated region
    $region14: #{tpu_custom_call.1} parent=1 // pred_check
      _
    $region15: #{tpu_custom_call.1} parent=1 // pred_check_branch
      %40 = sbr.rel (0) target = $region17
    $region16: #{tpu_custom_call.1} parent=1 // pred_region
      _
    $region17: #{tpu_custom_call.1} parent=1 // pred_fallthru
      _
    // Predicated region
    $region18: #{tpu_custom_call.1} parent=1 // pred_check
      _
    $region19: #{tpu_custom_call.1} parent=1 // pred_check_branch
      %42 = sbr.rel (0) target = $region21
    $region20: #{tpu_custom_call.1} parent=1 // pred_region
      %43 = dma.done [#allocation4], 256
    $region21: #{tpu_custom_call.1} parent=1 // pred_fallthru
      _
    // Predicated region
    $region22: #{tpu_custom_call.1} parent=1 // pred_check
      _
    $region23: #{tpu_custom_call.1} parent=1 // pred_check_branch
      %45 = sbr.rel (0) target = $region25
    $region24: #{tpu_custom_call.1} parent=1 // pred_region
      %46 = dma.done [#allocation7], 256
    $region25: #{tpu_custom_call.1} parent=1 // pred_fallthru
      _
    %v47 = vld [vmem:[%s0] sm:$0x3]
    %v50 = vunpack.c.l.s4 1966171168
    %v51 = vunpack.c.0.s8 %v50
    %v52 = vlaneseq
    %v53 = vshrl.u32 %v52, 7
    %v54 = vsub.s32 %v51, %v53
    %v55 = vrot.slane %v47, %v54
    %v56 = vcombine.high %v55, %v55
    %v58 = vunpack.c.l.s4 1966171168
    %v59 = vunpack.c.0.s8 %v58
    %v60 = vlaneseq
    %v61 = vshrl.u32 %v60, 7
    %v62 = vsub.s32 %v59, %v61
    %v63 = vrot.slane %v55, %v62
    %v65 = vunpack.c.l.s4 1966171168
    %v66 = vunpack.c.0.s8 %v65
    %v67 = vlaneseq
    %v68 = vshrl.u32 %v67, 7
    %v69 = vsub.s32 %v66, %v68
    %v70 = vrot.slane %v56, %v69
    %s71 = sld [smem:[#allocation2]]
    %v72 = vld [vmem:[#allocation3] sm:$0xff]
    %v73 = vld [vmem:[#allocation3 + $0x8] sm:$0xff]
    %v74 = vlaneseq
    %v75 = vshrl.u32 %v74, 7
    %v76 = vsub.s32 0, %v75
    %v77 = vrot.slane %v63, %v76
    %v78 = vlaneseq
    %v79 = vshrl.u32 %v78, 7
    %v80 = vsub.s32 0, %v79
    %v81 = vrot.slane %v70, %v80
    %v84 = vmul.f32 %v72, %v77
    %v85 = vmul.f32 %v73, %v81
    %vm86 = vcmask 261120
    %v87 = vsel %vm86, %v84, 0.0
    %88 = vadd.xlane.f32.xlu0 %v87
    %v89 = vpop.xlane.xlu0 %88
    %v90 = vsel %vm86, %v85, 0.0
    %91 = vadd.xlane.f32.xlu0 %v90
    %v92 = vpop.xlane.xlu0 %91
    %v93 = vstv %s71
    %v94 = vadd.f32 %v89, %v93
    %v95 = vadd.f32 %v92, %v93
    %v96 = vld [vmem:[#allocation6] sm:$0xff]
    %v97 = vld [vmem:[#allocation6 + $0x8] sm:$0xff]
    %v98 = vmul.f32 %v96, %v77
    %v99 = vmul.f32 %v97, %v81
    %v100 = vsel %vm86, %v98, 0.0
    %101 = vadd.xlane.f32.xlu0 %v100
    %v102 = vpop.xlane.xlu0 %101
    %v103 = vsel %vm86, %v99, 0.0
    %104 = vadd.xlane.f32.xlu0 %v103
    %v105 = vpop.xlane.xlu0 %104
    %v106 = vadd.f32 %v102, %v93
    %v107 = vadd.f32 %v105, %v93
    %v110 = vlaneseq
    %v111 = vand.u32 %v110, 127
    %v112 = vlaneseq
    %v113 = vshrl.u32 %v112, 7
    %v114 = vsub.s32 %v111, %v113
    %v115 = vrot.slane %v94, %v114
    %v116 = vlaneseq
    %v117 = vshrl.u32 %v116, 7
    %v118 = vsub.s32 %v111, %v117
    %v119 = vrot.slane %v95, %v118
    %vm122 = vcmask 57344
    %123 = vst.msk [vmem:[#allocation8] sm:$0x1] %vm122, %v115
    %124 = vst.msk [vmem:[#allocation8 + $0x2] sm:$0x1] %vm122, %v119
    %v127 = vlaneseq
    %v128 = vshrl.u32 %v127, 7
    %v129 = vsub.s32 %v111, %v128
    %v130 = vrot.slane %v106, %v129
    %v131 = vlaneseq
    %v132 = vshrl.u32 %v131, 7
    %v133 = vsub.s32 %v111, %v132
    %v134 = vrot.slane %v107, %v133
    %137 = vst.msk [vmem:[#allocation8 + $0x1] sm:$0x1] %vm122, %v130
    %138 = vst.msk [vmem:[#allocation8 + $0x3] sm:$0x1] %vm122, %v134
    // Predicated region
    $region26: #{tpu_custom_call.1} parent=1 // pred_check
      _
    $region27: #{tpu_custom_call.1} parent=1 // pred_check_branch
      %140 = sbr.rel (0) target = $region29
    $region28: #{tpu_custom_call.1} parent=1 // pred_region
      %s142 = ssub.s32 64, 64
      %143 = vsyncadd [#allocation5], %s142
      %s144 = sshll.u32 [#allocation8], 4
      %s145 = int_to_ptr.vmem [resolvable:$true] %s144
      %150 = dma.vmem_to_hbm [thread:$0]  %s145, 64, %s4, [#allocation5], 32, 32, 2
    $region29: #{tpu_custom_call.1} parent=1 // pred_fallthru
      _
    // Predicated region
    $region30: #{tpu_custom_call.1} parent=1 // pred_check
      _
    $region31: #{tpu_custom_call.1} parent=1 // pred_check_branch
      %152 = sbr.rel (0) target = $region33
    $region32: #{tpu_custom_call.1} parent=1 // pred_region
      %153 = dma.done [#allocation5], 64
    $region33: #{tpu_custom_call.1} parent=1 // pred_fallthru
      _
    %154 = vsyncpa [#allocation4], 1
    %155 = vsyncpa [#allocation7], 1
    %156 = vsyncpa [#allocation5], 1

</llo_original>
